<compile_context>
chip_gen: v7x
topology: tpu7x:2x2x1
jax: 0.10.0
libtpu: 0.0.40
codegen_flags: <defaults>
</compile_context>

<pallas_src>
import jax
import jax.numpy as jnp
from jax import lax
from jax.experimental import pallas as pl
from jax.experimental.pallas import tpu as pltpu


# ----------------------------------------------------------------------------
# Pallas kernel: bias-free linear layer, lane-dense (transposed) output
#   out^T[o, m] = sum_h W[o, h] * X[m, h]
# ----------------------------------------------------------------------------
def _linear_nobias_kernel(x_ref, w_ref, ot_ref):
    # x_ref : (tm, H) tile of activations
    # w_ref : (O, H) full weight in torch layout (tiny; resident via invariant
    #         index_map — any re-DMA is ~128 bytes and negligible)
    # ot_ref: (O, tm) lane-dense output tile (tm on the 128-lane axis)
    ot_ref[...] = lax.dot_general(
        w_ref[...],
        x_ref[...],
        dimension_numbers=(((1,), (1,)), ((), ())),  # contract on H for both
        preferred_element_type=jnp.float32,
    ).astype(ot_ref.dtype)


def _choose_row_tile(n_rows, tm_max):
    """Row tile: multiple of 128 (it becomes the lane axis of out^T), capped at
    tm_max, and sized so the grid has >= 2 steps when possible (v7x megacore)."""
    tm = 128 * max(1, pl.cdiv(n_rows, 2 * 128))
    return min(tm, tm_max)


def linear_nobias(x, w, *, tm_max=2048, x_dtype=None):
    """Pallas equivalent of torch.nn.Linear(H, O, bias=False):
       (N, H) @ (O, H)^T -> (N, O), f32 output."""
    N, H = x.shape
    O, H2 = w.shape
    assert H == H2, (x.shape, w.shape)

    # Optional activation downcast (e.g. bf16) — dominant HBM traffic is X.
    if x_dtype is not None and x.dtype != jnp.dtype(x_dtype):
        x = x.astype(x_dtype)
    w = w.astype(x.dtype)  # keep operand dtypes matched; accumulation stays f32

    tm = _choose_row_tile(N, tm_max)
    n_pad = tm * pl.cdiv(N, tm)
    if n_pad != N:
        # Zero-pad rows instead of falling back to a single whole-array block;
        # padded rows produce zero output columns that are sliced off below.
        x = jnp.pad(x, ((0, n_pad - N), (0, 0)))
    grid = (n_pad // tm,)

    itemsize = jnp.dtype(x.dtype).itemsize
    cost = pl.CostEstimate(
        flops=2 * n_pad * H * O,
        transcendentals=0,
        bytes_accessed=itemsize * (n_pad * H + O * H) + 4 * O * n_pad,
    )

    out_t = pl.pallas_call(
        _linear_nobias_kernel,
        out_shape=jax.ShapeDtypeStruct((O, n_pad), jnp.float32),
        grid_spec=pltpu.PrefetchScalarGridSpec(
            num_scalar_prefetch=0,
            grid=grid,
            in_specs=[
                pl.BlockSpec((tm, H), lambda i: (i, 0)),   # activation row tile
                pl.BlockSpec((O, H), lambda i: (0, 0)),    # tiny invariant weight
            ],
            # Lane-dense output: tm (multiple of 128) on the lane axis, O=2 on
            # the sublane axis (equal to the full dim, so the (8,128) rule holds).
            out_specs=pl.BlockSpec((O, tm), lambda i: (0, i)),
        ),
        compiler_params=pltpu.CompilerParams(
            dimension_semantics=("parallel",),
            # Explicit VMEM budget, safe on v5e/v6e (128 MiB) and v7x (64 MiB);
            # actual use is ~3 MiB (double-buffered (tm,128)-padded X tile).
            vmem_limit_bytes=32 * 1024 * 1024,
        ),
        cost_estimate=cost,
    )(x, w)

    # Slice off row padding and transpose back to torch layout (N, O).
    # This is plain-JAX glue on a (2, N) array — negligible.
    return out_t[:, :N].T


# ----------------------------------------------------------------------------
# GPT module (forward pass only; lossR / lossBC are training-time losses)
# ----------------------------------------------------------------------------
class GPT:
    def __init__(self, cond, layers, eps1_r, eps, P, initial_c, xy_BC, BC_u,
                 f_hat, activation_resid, activation_BC, kap_curl2, omk_Ez,
                 dEz_x, dEz_y, compute_dtype=None):
        self.cond = cond
        self.layers = layers
        self.eps1_r = eps1_r
        self.eps = eps
        self.activation = P                       # list of callables (precomputed PINNs)
        self.activation_resid = activation_resid  # (N_resid, layers[1])
        self.activation_BC = activation_BC        # (N_BC, layers[1])
        self.kap_curl2 = kap_curl2
        self.omk_eps_r1_Ez = None if omk_Ez is None else omk_Ez * eps1_r
        self.omk_eps_r2_Ez = None if omk_Ez is None else omk_Ez * eps
        self.dEz_x = dEz_x
        self.dEz_y = dEz_y
        self.xy_BC = xy_BC
        self.BC_u = BC_u
        self.f_hat = f_hat
        # Optional activation compute dtype (e.g. jnp.bfloat16) — halves the
        # dominant HBM read traffic; None keeps the original f32 semantics.
        self.compute_dtype = compute_dtype
        # linears[0].weight = ones(layers[1], layers[0])  (unused in forward)
        self.w0 = jnp.ones((layers[1], layers[0]), jnp.float32)
        # linears[1] (== linears[-1]) weight = initial_c, shape (layers[2], layers[1])
        self.w_last = initial_c
        # TODO(synk): lossR / lossBC depend on external helper fns (EHx_abc_r_, ...)
        # and torch-autograd-derived matrices; only forward() is implemented here.

    def forward(self, datatype=None, test_data=None):
        if test_data is not None:
            cols = [self.activation[i](test_data)
                    for i in range(int(self.layers[1] // 2))]
            a = jnp.concatenate(cols, axis=1)               # (N, layers[1]) — glue
            return linear_nobias(a, self.w_last, x_dtype=self.compute_dtype)
        if datatype == 'residual':
            return linear_nobias(self.activation_resid, self.w_last,
                                 x_dtype=self.compute_dtype)
        if datatype == 'boundary':
            return linear_nobias(self.activation_BC, self.w_last,
                                 x_dtype=self.compute_dtype)
        return None

    def forward_residual_and_boundary(self):
        """Fused residual + boundary branch: one pallas_call instead of two
        (single launch / pipeline warm-up for the training-loss path)."""
        a = jnp.concatenate([self.activation_resid, self.activation_BC], axis=0)
        out = linear_nobias(a, self.w_last, x_dtype=self.compute_dtype)
        n_r = self.activation_resid.shape[0]
        return out[:n_r], out[n_r:]


# ----------------------------------------------------------------------------
# Demo / self-check
# ----------------------------------------------------------------------------
if __name__ == "__main__":
    key = jax.random.PRNGKey(0)
    k1, k2, k3, k4 = jax.random.split(key, 4)

    # small but representative GPT-PINN shapes (ragged N to exercise padding)
    layers = [2, 16, 2]          # input (x,y), 8 precomputed neurons * 2 (re/im), output 2
    N_resid, N_BC, N_test = 256, 120, 200

    initial_c = jax.random.normal(k1, (layers[2], layers[1]), jnp.float32) * 0.1
    activation_resid = jax.random.normal(k2, (N_resid, layers[1]), jnp.float32)
    activation_BC = jax.random.normal(k3, (N_BC, layers[1]), jnp.float32)
    test_data = jax.random.uniform(k4, (N_test, layers[0]), jnp.float32)

    # precomputed "PINN" networks P[i]: each maps (N,2) coords -> (N,2) (re, im)
    def make_P(i):
        def P_i(td):
            re = jnp.sin((i + 1.0) * td[:, 0] + td[:, 1])
            im = jnp.cos((i + 1.0) * td[:, 1] - td[:, 0])
            return jnp.stack([re, im], axis=1)
        return P_i

    P = [make_P(i) for i in range(layers[1] // 2)]

    # ---------------- f32 model (exact torch semantics) ----------------
    model = GPT(cond=None, layers=layers, eps1_r=1.0, eps=2.0, P=P,
                initial_c=initial_c, xy_BC=None, BC_u=None, f_hat=None,
                activation_resid=activation_resid, activation_BC=activation_BC,
                kap_curl2=None, omk_Ez=None, dEz_x=None, dEz_y=None)

    # --- residual branch ---
    out_resid = jax.block_until_ready(model.forward(datatype='residual'))
    ref_resid = activation_resid @ initial_c.T
    assert out_resid.shape == (N_resid, layers[2])
    assert jnp.allclose(out_resid, ref_resid, atol=1e-5, rtol=1e-5)

    # --- boundary branch ---
    out_bc = jax.block_until_ready(model.forward(datatype='boundary'))
    ref_bc = activation_BC @ initial_c.T
    assert out_bc.shape == (N_BC, layers[2])
    assert jnp.allclose(out_bc, ref_bc, atol=1e-5, rtol=1e-5)

    # --- fused residual + boundary (single launch) ---
    fr, fb = model.forward_residual_and_boundary()
    fr = jax.block_until_ready(fr)
    fb = jax.block_until_ready(fb)
    assert jnp.allclose(fr, ref_resid, atol=1e-5, rtol=1e-5)
    assert jnp.allclose(fb, ref_bc, atol=1e-5, rtol=1e-5)

    # --- test_data branch ---
    out_test = jax.block_until_ready(model.forward(test_data=test_data))
    a_ref = jnp.concatenate([P[i](test_data) for i in range(layers[1] // 2)], axis=1)
    ref_test = a_ref @ initial_c.T
    assert out_test.shape == (N_test, layers[2])
    assert jnp.allclose(out_test, ref_test, atol=1e-5, rtol=1e-5)

    # ---------------- bf16-activation model (bandwidth-optimized path) -------
    model_bf16 = GPT(cond=None, layers=layers, eps1_r=1.0, eps=2.0, P=P,
                     initial_c=initial_c, xy_BC=None, BC_u=None, f_hat=None,
                     activation_resid=activation_resid,
                     activation_BC=activation_BC,
                     kap_curl2=None, omk_Ez=None, dEz_x=None, dEz_y=None,
                     compute_dtype=jnp.bfloat16)
    out_resid_bf16 = jax.block_until_ready(model_bf16.forward(datatype='residual'))
    assert out_resid_bf16.shape == (N_resid, layers[2])
    assert out_resid_bf16.dtype == jnp.float32
    assert jnp.allclose(out_resid_bf16, ref_resid, atol=5e-2, rtol=5e-2)

    print("KERNEL_OK")
</pallas_src>

<mosaic_0001>
module attributes {stable_mosaic.version = 11 : i64} {
  func.func @_linear_nobias_kernel(%arg0: i32, %arg1: memref<128x16xf32, #tpu.memory_space<vmem>>, %arg2: memref<2x16xf32, #tpu.memory_space<vmem>>, %arg3: memref<2x128xf32, #tpu.memory_space<vmem>>) attributes {dimension_semantics = [#tpu.dimension_semantics<parallel>], iteration_bounds = array<i64: 2>, scalar_prefetch = 0 : i64, scratch_operands = 0 : i64, tpu.core_type = #tpu.core_type<tc>, window_params = [{transform_indices = @transform_0, window_bounds = array<i64: 128, 16>}, {pipeline_mode = #tpu.pipeline_mode<synchronous>, transform_indices = @transform_1, window_bounds = array<i64: 2, 16>}, {transform_indices = @transform_2, window_bounds = array<i64: 2, 128>}]} {
    %c0 = arith.constant 0 : index
    %c0_0 = arith.constant 0 : index
    %0 = vector.load %arg2[%c0, %c0_0] : memref<2x16xf32, #tpu.memory_space<vmem>>, vector<2x16xf32>
    %c0_1 = arith.constant 0 : index
    %c0_2 = arith.constant 0 : index
    %1 = vector.load %arg1[%c0_1, %c0_2] : memref<128x16xf32, #tpu.memory_space<vmem>>, vector<128x16xf32>
    %cst = arith.constant dense<0.000000e+00> : vector<2x128xf32>
    %2 = tpu.matmul %0, %1, %cst {dimension_numbers = #tpu.dot_dimension_numbers<[1], [1], [0], [0], [0, 0, 1, 0], [], []>} : vector<2x16xf32>, vector<128x16xf32>, vector<2x128xf32> -> vector<2x128xf32>
    %c0_3 = arith.constant 0 : index
    %c0_4 = arith.constant 0 : index
    %3 = vector.load %arg3[%c0_3, %c0_4] : memref<2x128xf32, #tpu.memory_space<vmem>>, vector<2x128xf32>
    tpu.vector_store %arg3[%c0_3, %c0_4], %2 {strides = array<i32>} : memref<2x128xf32, #tpu.memory_space<vmem>>, vector<2x128xf32>,
    return
  }
  func.func @transform_0(%arg0: i32) -> (i32, i32) {
    %c0_i32 = arith.constant 0 : i32
    %c0_i32_0 = arith.constant 0 : i32
    return %arg0, %c0_i32 : i32, i32
  }
  func.func @transform_1(%arg0: i32) -> (i32, i32) {
    %c0_i32 = arith.constant 0 : i32
    %c0_i32_0 = arith.constant 0 : i32
    %c0_i32_1 = arith.constant 0 : i32
    return %c0_i32, %c0_i32_0 : i32, i32
  }
  func.func @transform_2(%arg0: i32) -> (i32, i32) {
    %c0_i32 = arith.constant 0 : i32
    %c0_i32_0 = arith.constant 0 : i32
    return %c0_i32, %arg0 : i32, i32
  }
}

</mosaic_0001>

<llo_original>
// kernel: tpu_custom_call.1
$region0: #{tpu_custom_call.1}
  #allocation0 [shape = 'u32[]', space=smem, size = 0x4, offset = 0x4, fixed_abs, tag = 'smem constant byte address 0x4 - core index']
  #allocation1 [shape = 'u32[144,128]{1,0:T(1,128)}', space=vmem, size = 0x12000, scoped, tag = 'internal scratch']
  %s0 = inlined_call_operand.vmem [shape: f32[256,16], index: 0, kind: input, shape index: {}]
  %s1 = inlined_call_operand.vmem [shape: f32[2,16], index: 1, kind: input, shape index: {}]
  %s2 = inlined_call_operand.hbm [shape: f32[2,256], index: 2, kind: output, shape index: {}]
  %s3 = sld [smem:[#allocation0]]
  $region41: #{tpu_custom_call.1} parent=0
    _
  %s5 = ssub.s32 1, %s3
  %s6 = scalar_select 0, %s5, %s3
  $region1: #{tpu_custom_call.1} parent=0
    #allocation2 [shape = 'u8[2048]{0}', space=vmem, size = 0x800, scoped, tag = 'output window, operand 0']
    #allocation3 [shape = 's32[2]{0}', space=sflag, size = 0x8, scoped, tag = 'scoped memory for tpu_custom_call.1']
    %7 = vsyncpa [#allocation3], 0
    %s8 = scalar_lea.sflag [#allocation3], 1
    %9 = vsyncpa %s8, 0
    loop: start=0, step=1, limit=4
    $region2: #{tpu_custom_call.1} parent=1 // loop_pre_header
      _
    $region3: #{tpu_custom_call.1} parent=1 // loop_header
      %s11 = sphi 0, %s15
      %p12 = scmp.ge.s32.totalorder %s11, 4
      %s21 = sphi 0, %s23
      %s24 = sphi 0, %s21
      %s25 = sphi 0, %s24
      %s41 = sphi 0, %s25
      %s45 = sphi 0, %s45
      %s47 = sphi 0, %s45
      %s48 = sphi 0, %s47
      %s62 = sphi 0, %s48
      %s68 = sphi 0, %s70
      %s71 = sphi 0, %s68
      %s72 = sphi 0, %s71
      %s88 = sphi 0, %s72
    $region4: #{tpu_custom_call.1} parent=1 // loop_header_branch
      %14 = sbr.rel (%p12) target = $region8
    $region5: #{tpu_custom_call.1} parent=1 // loop_body
      %s16 = ssub.s32 %s11, 1
      %s17 = ssub.s32 %s11, 2
      %s18 = sadd.s32 %s11, 1
      %s19 = ssub.s32 %s11, %s18
      %p20 = scmp.eq.s32.totalorder %s19, 0
      %s22 = sadd.s32 %s21, 1
      %s23 = scalar_select %p20, %s21, %s22
      %p26 = pneg %p20
      %p27 = scmp.eq.s32.totalorder %s11, 1
      %p28 = por %p26, %p27
      %p29 = scmp.ne.s32.totalorder %s21, %s24
      %p30 = scmp.eq.s32.totalorder %s11, 0
      %p31 = por %p29, %p30
      %p32 = scmp.ne.s32.totalorder %s21, %s24
      %p33 = scmp.eq.s32.totalorder %s16, 1
      %p34 = por %p32, %p33
      %p35 = scmp.ne.s32.totalorder %s24, %s25
      %p36 = scmp.eq.s32.totalorder %s16, 0
      %p37 = por %p35, %p36
      %p38 = scmp.ne.s32.totalorder %s24, %s25
      %p39 = scmp.eq.s32.totalorder %s17, 1
      %p40 = por %p38, %p39
      %p42 = scmp.ne.s32.totalorder %s25, %s41
      %p43 = scmp.eq.s32.totalorder %s17, 0
      %p44 = por %p42, %p43
      %s46 = sadd.s32 %s45, 1
      %p49 = scmp.eq.s32.totalorder %s11, 1
      %p50 = scmp.ne.s32.totalorder %s45, %s47
      %p51 = scmp.eq.s32.totalorder %s11, 0
      %p52 = por %p50, %p51
      %p53 = scmp.ne.s32.totalorder %s45, %s47
      %p54 = scmp.eq.s32.totalorder %s16, 1
      %p55 = por %p53, %p54
      %p56 = scmp.ne.s32.totalorder %s47, %s48
      %p57 = scmp.eq.s32.totalorder %s16, 0
      %p58 = por %p56, %p57
      %p59 = scmp.ne.s32.totalorder %s47, %s48
      %p60 = scmp.eq.s32.totalorder %s17, 1
      %p61 = por %p59, %p60
      %p63 = scmp.ne.s32.totalorder %s48, %s62
      %p64 = scmp.eq.s32.totalorder %s17, 0
      %p65 = por %p63, %p64
      %s66 = ssub.s32 %s11, %s18
      %p67 = scmp.eq.s32.totalorder %s66, 0
      %s69 = sadd.s32 %s68, 1
      %s70 = scalar_select %p67, %s68, %s69
      %p73 = pneg %p67
      %p74 = scmp.eq.s32.totalorder %s11, 1
      %p75 = por %p73, %p74
      %p76 = scmp.ne.s32.totalorder %s68, %s71
      %p77 = scmp.eq.s32.totalorder %s11, 0
      %p78 = por %p76, %p77
      %p79 = scmp.ne.s32.totalorder %s68, %s71
      %p80 = scmp.eq.s32.totalorder %s16, 1
      %p81 = por %p79, %p80
      %p82 = scmp.ne.s32.totalorder %s71, %s72
      %p83 = scmp.eq.s32.totalorder %s16, 0
      %p84 = por %p82, %p83
      %p85 = scmp.ne.s32.totalorder %s71, %s72
      %p86 = scmp.eq.s32.totalorder %s17, 1
      %p87 = por %p85, %p86
      %p89 = scmp.ne.s32.totalorder %s72, %s88
      %p90 = scmp.eq.s32.totalorder %s17, 0
      %p91 = por %p89, %p90
      %p92 = scmp.le.s32.totalorder 1, %s11
      %p93 = scmp.lt.s32.totalorder %s11, 3
      %p94 = pnand %p92, %p93
      %p95 = pneg %p94
      // Predicated region
      $region9: #{tpu_custom_call.1} parent=5 // pred_check
        _
      $region10: #{tpu_custom_call.1} parent=5 // pred_check_branch
        %97 = sbr.rel (%p94) target = $region12
      $region11: #{tpu_custom_call.1} parent=5 // pred_region
        %s98 = ssub.s32 %s11, 1
        // Predicated region
        $region13: #{tpu_custom_call.1} parent=11 // pred_check
          %p99 = pneg %p58
        $region14: #{tpu_custom_call.1} parent=11 // pred_check_branch
          %101 = sbr.rel (%p99) target = $region16
        $region15: #{tpu_custom_call.1} parent=11 // pred_region
          _
        $region16: #{tpu_custom_call.1} parent=11 // pred_fallthru
          _
      $region12: #{tpu_custom_call.1} parent=5 // pred_fallthru
        _
      %p102 = scmp.lt.s32.totalorder %s11, 2
      // Predicated region
      $region17: #{tpu_custom_call.1} parent=5 // pred_check
        %p103 = pneg %p102
      $region18: #{tpu_custom_call.1} parent=5 // pred_check_branch
        %105 = sbr.rel (%p103) target = $region20
      $region19: #{tpu_custom_call.1} parent=5 // pred_region
        // Predicated region
        $region21: #{tpu_custom_call.1} parent=19 // pred_check
          %p106 = pneg %p31
        $region22: #{tpu_custom_call.1} parent=19 // pred_check_branch
          %108 = sbr.rel (%p106) target = $region24
        $region23: #{tpu_custom_call.1} parent=19 // pred_region
          %s109 = smul.u32 16, %s11
          %p110 = scmp.lt.s32.totalorder %s109, 31
          %s111 = scalar_select %p110, %s109, 31
          %s112 = smul.addr %s111, 8
          %s113 = scalar_lea.vmem %s0, %s112
          %s114 = smul.u32 16, %s11
        $region24: #{tpu_custom_call.1} parent=19 // pred_fallthru
          _
      $region20: #{tpu_custom_call.1} parent=5 // pred_fallthru
        _
      %p115 = scmp.le.s32.totalorder 1, %s11
      %p116 = scmp.lt.s32.totalorder %s11, 3
      %p117 = pnand %p115, %p116
      %p118 = pneg %p117
      // Predicated region
      $region25: #{tpu_custom_call.1} parent=5 // pred_check
        _
      $region26: #{tpu_custom_call.1} parent=5 // pred_check_branch
        %120 = sbr.rel (%p117) target = $region28
      $region27: #{tpu_custom_call.1} parent=5 // pred_region
        %s121 = ssub.s32 %s11, 1
        %s122 = smul.u32 16, %s16
        %p123 = scmp.lt.s32.totalorder %s122, 31
        %s124 = scalar_select %p123, %s122, 31
        %s125 = smul.addr %s124, 8
        %s126 = scalar_lea.vmem %s0, %s125
        %p127 = pneg %p37
        %p128 = pneg %p34
        %p129 = pneg %p58
        %p130 = pneg %p55
        %p131 = pneg %p84
        %p132 = pneg %p81
        %s133 = sand.u32 %s71, 1
        %s134 = scalar_lea.sflag [#allocation3], %s133
        %s135 = sand.u32 %s71, 1
        %s136 = smul.addr %s135, 2
        %s137 = scalar_lea.vmem [#allocation2], %s136
        %s138 = smul.u32 16, %s16
        %p139 = scmp.lt.s32.totalorder %s138, 31
        %s140 = scalar_select %p139, %s138, 31
        %s141 = smul.addr %s140, 8
        %s142 = scalar_lea.vmem %s0, %s141
        %s143 = smul.u32 16, %s16
        %v144 = vld [vmem:[%s1] sm:$0x3]
        %v145 = vld [vmem:[%s142] sm:$0xff]
        %v146 = vld [vmem:[%s142 + $0x8] sm:$0xff]
        %v147 = vld [vmem:[%s142 + $0x10] sm:$0xff]
        %v148 = vld [vmem:[%s142 + $0x18] sm:$0xff]
        %v149 = vld [vmem:[%s142 + $0x20] sm:$0xff]
        %v150 = vld [vmem:[%s142 + $0x28] sm:$0xff]
        %v151 = vld [vmem:[%s142 + $0x30] sm:$0xff]
        %v152 = vld [vmem:[%s142 + $0x38] sm:$0xff]
        %v153 = vld [vmem:[%s142 + $0x40] sm:$0xff]
        %v154 = vld [vmem:[%s142 + $0x48] sm:$0xff]
        %v155 = vld [vmem:[%s142 + $0x50] sm:$0xff]
        %v156 = vld [vmem:[%s142 + $0x58] sm:$0xff]
        %v157 = vld [vmem:[%s142 + $0x60] sm:$0xff]
        %v158 = vld [vmem:[%s142 + $0x68] sm:$0xff]
        %v159 = vld [vmem:[%s142 + $0x70] sm:$0xff]
        %v160 = vld [vmem:[%s142 + $0x78] sm:$0xff]
        %vm161 = vcmask 130048
        %v163 = vsel %vm161, %v144, 0
        %v166 = vsel %vm161, %v145, 0
        %v169 = vsel %vm161, %v146, 0
        %v172 = vsel %vm161, %v147, 0
        %v175 = vsel %vm161, %v148, 0
        %v178 = vsel %vm161, %v149, 0
        %v181 = vsel %vm161, %v150, 0
        %v184 = vsel %vm161, %v151, 0
        %v187 = vsel %vm161, %v152, 0
        %v190 = vsel %vm161, %v153, 0
        %v193 = vsel %vm161, %v154, 0
        %v196 = vsel %vm161, %v155, 0
        %v199 = vsel %vm161, %v156, 0
        %v202 = vsel %vm161, %v157, 0
        %v205 = vsel %vm161, %v158, 0
        %v208 = vsel %vm161, %v159, 0
        %v211 = vsel %vm161, %v160, 0
        %213 = vmatprep.subr.mxu0 0.0
        %214 = vmatpush1.xpose.msra.mxu0 %v166
        %215 = vmatprep.subr.mxu0 0.0
        %216 = vmatpush1.xpose.msra.mxu0 %v169
        %217 = vmatprep.subr.mxu0 0.0
        %218 = vmatpush1.xpose.msra.mxu0 %v172
        %219 = vmatprep.subr.mxu0 0.0
        %220 = vmatpush1.xpose.msra.mxu0 %v175
        %221 = vmatprep.subr.mxu0 0.0
        %222 = vmatpush1.xpose.msra.mxu0 %v178
        %223 = vmatprep.subr.mxu0 0.0
        %224 = vmatpush1.xpose.msra.mxu0 %v181
        %225 = vmatprep.subr.mxu0 0.0
        %226 = vmatpush1.xpose.msra.mxu0 %v184
        %227 = vmatprep.subr.mxu0 0.0
        %228 = vmatpush1.xpose.msra.mxu0 %v187
        %229 = vmatprep.subr.mxu0 0.0
        %230 = vmatpush1.xpose.msra.mxu0 %v190
        %231 = vmatprep.subr.mxu0 0.0
        %232 = vmatpush1.xpose.msra.mxu0 %v193
        %233 = vmatprep.subr.mxu0 0.0
        %234 = vmatpush1.xpose.msra.mxu0 %v196
        %235 = vmatprep.subr.mxu0 0.0
        %236 = vmatpush1.xpose.msra.mxu0 %v199
        %237 = vmatprep.subr.mxu0 0.0
        %238 = vmatpush1.xpose.msra.mxu0 %v202
        %239 = vmatprep.subr.mxu0 0.0
        %240 = vmatpush1.xpose.msra.mxu0 %v205
        %241 = vmatprep.subr.mxu0 0.0
        %242 = vmatpush1.xpose.msra.mxu0 %v208
        %243 = vmatprep.subr.mxu0 0.0
        %244 = vmatpush1.xpose.msra.mxu0 %v211
        %245 = vmatprep.subr.mxu0 0.0
        %246 = vmatpush1.xpose.msra.mxu0 0.0
        %247 = vmatprep.subr.mxu0 0.0
        %248 = vmatpush1.xpose.msra.mxu0 0.0
        %249 = vmatprep.subr.mxu0 0.0
        %250 = vmatpush1.xpose.msra.mxu0 0.0
        %251 = vmatprep.subr.mxu0 0.0
        %252 = vmatpush1.xpose.msra.mxu0 0.0
        %253 = vmatprep.subr.mxu0 0.0
        %254 = vmatpush1.xpose.msra.mxu0 0.0
        %255 = vmatprep.subr.mxu0 0.0
        %256 = vmatpush1.xpose.msra.mxu0 0.0
        %257 = vmatprep.subr.mxu0 0.0
        %258 = vmatpush1.xpose.msra.mxu0 0.0
        %259 = vmatprep.subr.mxu0 0.0
        %260 = vmatpush1.xpose.msra.mxu0 0.0
        %261 = vmatprep.subr.mxu0 0.0
        %262 = vmatpush1.xpose.msra.mxu0 0.0
        %263 = vmatprep.subr.mxu0 0.0
        %264 = vmatpush1.xpose.msra.mxu0 0.0
        %265 = vmatprep.subr.mxu0 0.0
        %266 = vmatpush1.xpose.msra.mxu0 0.0
        %267 = vmatprep.subr.mxu0 0.0
        %268 = vmatpush1.xpose.msra.mxu0 0.0
        %269 = vmatprep.subr.mxu0 0.0
        %270 = vmatpush1.xpose.msra.mxu0 0.0
        %271 = vmatprep.subr.mxu0 0.0
        %272 = vmatpush1.xpose.msra.mxu0 0.0
        %273 = vmatprep.subr.mxu0 0.0
        %274 = vmatpush1.xpose.msra.mxu0 0.0
        %275 = vmatprep.subr.mxu0 0.0
        %276 = vmatpush1.xpose.msra.mxu0 0.0
        %277 = vmatprep.mubr.f32.mxu0 0.0
        %278 = vmatmul.mubr.f32.gmra.mrb[0].mxu0 %v163
        %v279 = vpop.f32.mrb[0].mxu0
        %v280 = vadd.f32 0.0, %v279
        %v281 = vpop.f32.mrb[0].mxu0
        %282 = vdwg.mxu0
        %283 = vst [vmem:[%s137] sm:$0x3] %v280
        %s284 = sand.u32 %s71, 1
        %s285 = scalar_lea.sflag [#allocation3], %s284
        %s286 = sand.u32 %s71, 1
        %s287 = smul.addr %s286, 2
        %s288 = scalar_lea.vmem [#allocation2], %s287
        // Predicated region
        $region29: #{tpu_custom_call.1} parent=27 // pred_check
          %p289 = pneg %p81
        $region30: #{tpu_custom_call.1} parent=27 // pred_check_branch
          %291 = sbr.rel (%p289) target = $region32
        $region31: #{tpu_custom_call.1} parent=27 // pred_region
          %s293 = ssub.s32 32, 32
          %294 = vsyncadd %s285, %s293
          %s295 = smul.addr %s16, 32
          %s296 = scalar_lea.hbm %s2, %s295
          %s298 = sshll.u32 %s288, 4
          %s299 = int_to_ptr.vmem [resolvable:$true] %s298
          %301 = dma.vmem_to_hbm [thread:$0]  %s299, 32, %s296, %s285
        $region32: #{tpu_custom_call.1} parent=27 // pred_fallthru
          _
      $region28: #{tpu_custom_call.1} parent=5 // pred_fallthru
        _
      %p302 = scmp.le.s32.totalorder 2, %s11
      // Predicated region
      $region33: #{tpu_custom_call.1} parent=5 // pred_check
        %p303 = pneg %p302
      $region34: #{tpu_custom_call.1} parent=5 // pred_check_branch
        %305 = sbr.rel (%p303) target = $region36
      $region35: #{tpu_custom_call.1} parent=5 // pred_region
        %s306 = ssub.s32 %s11, 2
        // Predicated region
        $region37: #{tpu_custom_call.1} parent=35 // pred_check
          %p307 = pneg %p87
        $region38: #{tpu_custom_call.1} parent=35 // pred_check_branch
          %309 = sbr.rel (%p307) target = $region40
        $region39: #{tpu_custom_call.1} parent=35 // pred_region
          %s310 = sand.u32 %s72, 1
          %s311 = scalar_lea.sflag [#allocation3], %s310
          %s312 = sand.u32 %s72, 1
          %s313 = smul.addr %s312, 2
          %s314 = scalar_lea.vmem [#allocation2], %s313
          %315 = dma.done %s311, 32
        $region40: #{tpu_custom_call.1} parent=35 // pred_fallthru
          _
      $region36: #{tpu_custom_call.1} parent=5 // pred_fallthru
        _
    $region6: #{tpu_custom_call.1} parent=1 // loop_footer
      %s15 = sadd.s32 1, %s11
    $region7: #{tpu_custom_call.1} parent=1 // loop_footer_branch
      %10 = sbr.rel target = $region3
    $region8: #{tpu_custom_call.1} parent=1 // loop_exit
      _
    %316 = vsyncpa [#allocation3], 1
    %s317 = scalar_lea.sflag [#allocation3], 1
    %318 = vsyncpa %s317, 1

</llo_original>
